<compile_context>
chip_gen: v7x
topology: tpu7x:2x2x1
jax: 0.10.0
libtpu: 0.0.40
codegen_flags: <defaults>
</compile_context>

<pallas_src>
import functools

import jax
import jax.numpy as jnp
from jax.experimental import pallas as pl
from jax.experimental.pallas import tpu as pltpu

MAX_TILE_ROWS = 1024              # (1024, 512) f32 block = 2 MiB per buffer
_LANE_CHOICES = (512, 256, 128)   # lane-dense slab widths (multiples of 128)


def _cdiv(a: int, b: int) -> int:
    return -(-a // b)


# --------------- TPU path: noise drawn in-kernel with the hardware PRNG -----
def _gaussian_noise_kernel_tpu(seed_ref, x_ref, o_ref, *, std):
    # Seed with (user_seed, tile_id) as independent seed words so neighbouring
    # tiles (and the two v7x TensorCores when the "parallel" axis is split)
    # draw decorrelated streams -- avoids adjacent-integer-seed correlation.
    pltpu.prng_seed(seed_ref[0], pl.program_id(0))
    # TODO(synk): on v5e, if the single EUP slot saturates on stateful_normal
    # (Box-Muller transcendentals), swap in a VPU-only CLT / inverse-CDF normal
    # built from pltpu.prng_random_bits to stay HBM-bound.
    noise = pltpu.stateful_normal(x_ref.shape, jnp.float32)
    o_ref[...] = (x_ref[...].astype(jnp.float32) + noise * std).astype(o_ref.dtype)


# --------------- Portable path: noise from jax.random, fused scale + add ----
def _add_scaled_noise_kernel(x_ref, n_ref, o_ref, *, std):
    o_ref[...] = (x_ref[...].astype(jnp.float32)
                  + n_ref[...].astype(jnp.float32) * std).astype(o_ref.dtype)


def gaussian_noise(x, seed, std, training=True):
    """Pallas equivalent of GaussianNoise.forward: y = x + std * N(0, 1)."""
    if not training:
        return x

    std = float(std)
    orig_shape = x.shape
    total = x.size

    # Lane-dense repack: pick the widest slab width that divides the element
    # count (no padding copy needed); only truly ragged totals pad the flat
    # tail by < LANE elements.
    lane = next((l for l in _LANE_CHOICES if total % l == 0), _LANE_CHOICES[0])
    rows = _cdiv(total, lane)
    padded = rows * lane != total

    flat = x.reshape(-1)
    if padded:
        # TODO(synk): for totals not divisible by 128 this pad + tail slice
        # each cost one extra HBM pass; a ragged-tail kernel would avoid it.
        flat = jnp.pad(flat, (0, rows * lane - total))
    x2 = flat.reshape(rows, lane)

    # Tile over rows. Small inputs get a single full-array block (always a
    # legal block shape); large inputs get (MAX_TILE_ROWS, lane) blocks and
    # Pallas masks the partial last block -- no padding up to a tile multiple.
    tile_rows = rows if rows <= MAX_TILE_ROWS else MAX_TILE_ROWS
    grid = _cdiv(rows, tile_rows)
    blk = (tile_rows, lane)

    out_shape = jax.ShapeDtypeStruct(x2.shape, x2.dtype)
    # "parallel" lets v7x's two TensorCores split the row axis (measured no-op
    # on single-TC v5e/v6e).  Default double-buffering is kept: HBM-bound.
    cparams = pltpu.CompilerParams(dimension_semantics=("parallel",))

    if jax.default_backend() == "tpu":
        kernel = functools.partial(_gaussian_noise_kernel_tpu, std=std)
        out2 = pl.pallas_call(
            kernel,
            out_shape=out_shape,
            grid_spec=pltpu.PrefetchScalarGridSpec(
                num_scalar_prefetch=1,                        # seed -> SMEM
                grid=(grid,),
                in_specs=[pl.BlockSpec(blk, lambda i, seed_ref: (i, 0))],
                out_specs=pl.BlockSpec(blk, lambda i, seed_ref: (i, 0)),
            ),
            compiler_params=cparams,
        )(jnp.asarray([seed], dtype=jnp.int32), x2)
    else:
        # pltpu.prng_* (hardware PRNG) has no CPU/interpret lowering; off-TPU
        # the standard normal comes from jax.random and only the scale + add
        # is fused in the Pallas kernel.  Not bit-identical to the TPU path.
        key = jax.random.PRNGKey(seed)
        n2 = jax.random.normal(key, x2.shape, dtype=jnp.float32)
        kernel = functools.partial(_add_scaled_noise_kernel, std=std)
        out2 = pl.pallas_call(
            kernel,
            out_shape=out_shape,
            grid_spec=pltpu.PrefetchScalarGridSpec(
                num_scalar_prefetch=0,
                grid=(grid,),
                in_specs=[pl.BlockSpec(blk, lambda i: (i, 0)),
                          pl.BlockSpec(blk, lambda i: (i, 0))],
                out_specs=pl.BlockSpec(blk, lambda i: (i, 0)),
            ),
            compiler_params=cparams,
        )(x2, n2)

    if padded:
        return out2.reshape(-1)[:total].reshape(orig_shape)
    return out2.reshape(orig_shape)


if __name__ == "__main__":
    key = jax.random.PRNGKey(0)
    x = jax.random.normal(key, (2, 4, 16, 16), dtype=jnp.float32)
    std = 0.1

    # Training mode: y = x + std * N(0, 1)
    y = gaussian_noise(x, seed=1234, std=std, training=True)
    y = jax.block_until_ready(y)
    assert y.shape == x.shape and y.dtype == x.dtype

    diff = y - x
    # Noise is present and of the right order of magnitude.
    assert float(jnp.std(diff)) > 0.2 * std
    assert float(jnp.max(jnp.abs(diff))) < 10.0 * std

    # Eval mode: identity.
    y_eval = gaussian_noise(x, seed=1234, std=std, training=False)
    y_eval = jax.block_until_ready(y_eval)
    assert bool(jnp.array_equal(y_eval, x))

    print("KERNEL_OK")
</pallas_src>

<mosaic_0001>
module attributes {stable_mosaic.version = 11 : i64} {
  func.func @_add_scaled_noise_kernel(%arg0: i32, %arg1: memref<4x512xf32, #tpu.memory_space<vmem>>, %arg2: memref<4x512xf32, #tpu.memory_space<vmem>>, %arg3: memref<4x512xf32, #tpu.memory_space<vmem>>) attributes {dimension_semantics = [#tpu.dimension_semantics<parallel>], iteration_bounds = array<i64: 1>, scalar_prefetch = 0 : i64, scratch_operands = 0 : i64, tpu.core_type = #tpu.core_type<tc>, window_params = [{transform_indices = @transform_0, window_bounds = array<i64: 4, 512>}, {transform_indices = @transform_1, window_bounds = array<i64: 4, 512>}, {transform_indices = @transform_2, window_bounds = array<i64: 4, 512>}]} {
    %c0 = arith.constant 0 : index
    %c0_0 = arith.constant 0 : index
    %0 = vector.load %arg1[%c0, %c0_0] : memref<4x512xf32, #tpu.memory_space<vmem>>, vector<4x512xf32>
    %c0_1 = arith.constant 0 : index
    %c0_2 = arith.constant 0 : index
    %1 = vector.load %arg2[%c0_1, %c0_2] : memref<4x512xf32, #tpu.memory_space<vmem>>, vector<4x512xf32>
    %cst = arith.constant 1.000000e-01 : f32
    %2 = vector.broadcast %cst : f32 to vector<4x512xf32>
    %3 = arith.mulf %1, %2 : vector<4x512xf32>
    %4 = arith.addf %0, %3 : vector<4x512xf32>
    %c0_3 = arith.constant 0 : index
    %c0_4 = arith.constant 0 : index
    %5 = vector.load %arg3[%c0_3, %c0_4] : memref<4x512xf32, #tpu.memory_space<vmem>>, vector<4x512xf32>
    tpu.vector_store %arg3[%c0_3, %c0_4], %4 {strides = array<i32>} : memref<4x512xf32, #tpu.memory_space<vmem>>, vector<4x512xf32>,
    return
  }
  func.func @transform_0(%arg0: i32) -> (i32, i32) {
    %c0_i32 = arith.constant 0 : i32
    %c0_i32_0 = arith.constant 0 : i32
    return %arg0, %c0_i32 : i32, i32
  }
  func.func @transform_1(%arg0: i32) -> (i32, i32) {
    %c0_i32 = arith.constant 0 : i32
    %c0_i32_0 = arith.constant 0 : i32
    return %arg0, %c0_i32 : i32, i32
  }
  func.func @transform_2(%arg0: i32) -> (i32, i32) {
    %c0_i32 = arith.constant 0 : i32
    %c0_i32_0 = arith.constant 0 : i32
    return %arg0, %c0_i32 : i32, i32
  }
}

</mosaic_0001>

<llo_original>
// kernel: tpu_custom_call.1
$region0: #{tpu_custom_call.1}
  #allocation0 [shape = 'u32[]', space=smem, size = 0x4, offset = 0x4, fixed_abs, tag = 'smem constant byte address 0x4 - core index']
  #allocation1 [shape = 'u32[144,128]{1,0:T(1,128)}', space=vmem, size = 0x12000, scoped, tag = 'internal scratch']
  %s0 = inlined_call_operand.hbm [shape: f32[4,512], index: 0, kind: input, shape index: {}]
  %s1 = inlined_call_operand.hbm [shape: f32[4,512], index: 1, kind: input, shape index: {}]
  %s2 = inlined_call_operand.hbm [shape: f32[4,512], index: 2, kind: output, shape index: {}]
  %s3 = sld [smem:[#allocation0]]
  $region26: #{tpu_custom_call.1} parent=0
    _
  %s5 = ssub.s32 1, %s3
  %s6 = scalar_select 0, %s5, %s3
  $region1: #{tpu_custom_call.1} parent=0
    #allocation2 [shape = 'u8[8192]{0}', space=vmem, size = 0x2000, scoped, tag = 'input window, operand 0, single buffered']
    #allocation3 [shape = 's32[1]{0}', space=sflag, size = 0x4, scoped, tag = 'scoped memory for tpu_custom_call.1']
    #allocation4 [shape = 's32[1]{0}', space=sflag, size = 0x4, scoped, tag = 'scoped memory for tpu_custom_call.1']
    #allocation5 [shape = 'u8[8192]{0}', space=vmem, size = 0x2000, scoped, tag = 'input window, operand 1, single buffered']
    #allocation6 [shape = 's32[1]{0}', space=sflag, size = 0x4, scoped, tag = 'scoped memory for tpu_custom_call.1']
    #allocation7 [shape = 'u8[8192]{0}', space=vmem, size = 0x2000, scoped, tag = 'output window, operand 0, single buffered']
    %7 = vsyncpa [#allocation3], 0
    %8 = vsyncpa [#allocation6], 0
    %9 = vsyncpa [#allocation4], 0
    // Predicated region
    $region2: #{tpu_custom_call.1} parent=1 // pred_check
      _
    $region3: #{tpu_custom_call.1} parent=1 // pred_check_branch
      %11 = sbr.rel (0) target = $region5
    $region4: #{tpu_custom_call.1} parent=1 // pred_region
      %s13 = ssub.s32 256, 256
      %14 = vsyncadd [#allocation3], %s13
      %s16 = sshll.u32 [#allocation2], 4
      %s17 = int_to_ptr.vmem [resolvable:$true] %s16
      %19 = dma.hbm_to_vmem [thread:$0]  %s0, 256, %s17, [#allocation3]
    $region5: #{tpu_custom_call.1} parent=1 // pred_fallthru
      _
    // Predicated region
    $region6: #{tpu_custom_call.1} parent=1 // pred_check
      _
    $region7: #{tpu_custom_call.1} parent=1 // pred_check_branch
      %21 = sbr.rel (0) target = $region9
    $region8: #{tpu_custom_call.1} parent=1 // pred_region
      %s23 = ssub.s32 256, 256
      %24 = vsyncadd [#allocation6], %s23
      %s26 = sshll.u32 [#allocation5], 4
      %s27 = int_to_ptr.vmem [resolvable:$true] %s26
      %29 = dma.hbm_to_vmem [thread:$0]  %s1, 256, %s27, [#allocation6]
    $region9: #{tpu_custom_call.1} parent=1 // pred_fallthru
      _
    // Predicated region
    $region10: #{tpu_custom_call.1} parent=1 // pred_check
      _
    $region11: #{tpu_custom_call.1} parent=1 // pred_check_branch
      %31 = sbr.rel (0) target = $region13
    $region12: #{tpu_custom_call.1} parent=1 // pred_region
      %32 = dma.done [#allocation3], 256
    $region13: #{tpu_custom_call.1} parent=1 // pred_fallthru
      _
    // Predicated region
    $region14: #{tpu_custom_call.1} parent=1 // pred_check
      _
    $region15: #{tpu_custom_call.1} parent=1 // pred_check_branch
      %34 = sbr.rel (0) target = $region17
    $region16: #{tpu_custom_call.1} parent=1 // pred_region
      %35 = dma.done [#allocation6], 256
    $region17: #{tpu_custom_call.1} parent=1 // pred_fallthru
      _
    %v36 = vld [vmem:[#allocation2] sm:$0xff]
    %v37 = vld [vmem:[#allocation2 + $0x8] sm:$0xff]
    %v38 = vld [vmem:[#allocation5] sm:$0xff]
    %v39 = vld [vmem:[#allocation5 + $0x8] sm:$0xff]
    %v40 = vmul.f32 %v38, 0.1
    %v41 = vmul.f32 %v39, 0.1
    %v42 = vadd.f32 %v36, %v40
    %v43 = vadd.f32 %v37, %v41
    %44 = vst [vmem:[#allocation7] sm:$0xff] %v42
    %45 = vst [vmem:[#allocation7 + $0x8] sm:$0xff] %v43
    // Predicated region
    $region18: #{tpu_custom_call.1} parent=1 // pred_check
      _
    $region19: #{tpu_custom_call.1} parent=1 // pred_check_branch
      %47 = sbr.rel (0) target = $region21
    $region20: #{tpu_custom_call.1} parent=1 // pred_region
      %s49 = ssub.s32 256, 256
      %50 = vsyncadd [#allocation4], %s49
      %s52 = sshll.u32 [#allocation7], 4
      %s53 = int_to_ptr.vmem [resolvable:$true] %s52
      %55 = dma.vmem_to_hbm [thread:$0]  %s53, 256, %s2, [#allocation4]
    $region21: #{tpu_custom_call.1} parent=1 // pred_fallthru
      _
    // Predicated region
    $region22: #{tpu_custom_call.1} parent=1 // pred_check
      _
    $region23: #{tpu_custom_call.1} parent=1 // pred_check_branch
      %57 = sbr.rel (0) target = $region25
    $region24: #{tpu_custom_call.1} parent=1 // pred_region
      %58 = dma.done [#allocation4], 256
    $region25: #{tpu_custom_call.1} parent=1 // pred_fallthru
      _
    %59 = vsyncpa [#allocation3], 1
    %60 = vsyncpa [#allocation6], 1
    %61 = vsyncpa [#allocation4], 1

</llo_original>
